<compile_context>
chip_gen: v5e
topology: v5e:2x2
jax: 0.10.0
libtpu: 0.0.40
codegen_flags: <defaults>
</compile_context>

<pallas_src>
import jax
import jax.numpy as jnp
from jax.experimental import pallas as pl
from jax.experimental.pallas import tpu as pltpu


def _round_up(x, m):
    return (x + m - 1) // m * m


def _subnet_kernel(x_ref, w_ref, o_ref):
    # x_ref: (TB, D) f32 tile streamed from HBM (double-buffered by BlockSpec)
    # w_ref: (1, D)  f32 lane-dense weight row, resident across the grid
    # o_ref: (TB, 1) f32 per-row dot products
    # GEMV with a single output column: keep it off the MXU; VPU mul + XLU reduce.
    o_ref[...] = jnp.sum(x_ref[...] * w_ref[...], axis=-1, keepdims=True)


def subnet_forward(x, weight, bias, *, target_tile_bytes=4 * 1024 * 1024):
    """subNet.forward: y = reshape(x, (B, -1)) @ W.T + b   (no activation).

    x:      (B, num_peak, num_tf) float32
    weight: (1, D) float32 with D = num_peak * num_tf  (torch nn.Linear layout)
    bias:   (1,)   float32
    returns (B, 1) float32
    """
    B = x.shape[0]
    D = x.shape[1] * x.shape[2]
    x2d = x.reshape(B, D)                 # flatten like torch .reshape (row-major)
    w_row = weight.reshape(1, D)          # lane-dense (1, D) weight row

    # Batch tile: multiple of 8 (sublane), ~target_tile_bytes of x per tile,
    # capped at 2048 rows. D stays a full (untiled) lane dimension.
    rows_for_target = max(8, (target_tile_bytes // (D * 4)) // 8 * 8)
    TB = int(min(2048, rows_for_target, _round_up(B, 8)))
    Bp = _round_up(B, TB)
    if Bp != B:                           # pad so every (TB, D) block is full
        x2d = jnp.pad(x2d, ((0, Bp - B), (0, 0)))

    tile_bytes = TB * D * 4
    vmem_limit = int(min(64 * 1024 * 1024,
                         max(16 * 1024 * 1024, 4 * tile_bytes)))

    out = pl.pallas_call(
        _subnet_kernel,
        out_shape=jax.ShapeDtypeStruct((Bp, 1), jnp.float32),
        grid_spec=pltpu.PrefetchScalarGridSpec(
            num_scalar_prefetch=0,
            grid=(Bp // TB,),
            in_specs=[
                pl.BlockSpec((TB, D), lambda i: (i, 0)),   # x: streamed per tile
                pl.BlockSpec((1, D), lambda i: (0, 0)),    # w: resident in VMEM
            ],
            out_specs=pl.BlockSpec((TB, 1), lambda i: (i, 0)),
        ),
        compiler_params=pltpu.CompilerParams(
            # Independent batch tiles: "parallel" lets Mosaic shard the grid across
            # both TensorCores on v7x (measured-neutral on single-TC v5e/v6e).
            dimension_semantics=("parallel",),
            vmem_limit_bytes=vmem_limit,
        ),
    )(x2d, w_row)

    # Bias is a single f32 scalar: cheap fused add in the wrapper, no padded VMEM tile.
    return out[:B] + bias.reshape(1, 1)


if __name__ == "__main__":
    # Small shapes consistent with subNet(num_peak, num_tf)
    batch, num_peak, num_tf = 8, 4, 8
    D = num_peak * num_tf

    key = jax.random.PRNGKey(0)
    kx, kw, kb = jax.random.split(key, 3)

    x = jax.random.normal(kx, (batch, num_peak, num_tf), dtype=jnp.float32)
    # Deterministic parameter init (synthetic; mimics nn.Linear(D, 1) shapes)
    bound = 1.0 / (D ** 0.5)
    weight = jax.random.uniform(kw, (1, D), minval=-bound, maxval=bound,
                                dtype=jnp.float32)
    bias = jax.random.uniform(kb, (1,), minval=-bound, maxval=bound,
                              dtype=jnp.float32)

    out = jax.block_until_ready(subnet_forward(x, weight, bias))

    # Reference check in plain JAX
    ref = x.reshape(batch, -1) @ weight.T + bias
    assert out.shape == (batch, 1)
    assert jnp.allclose(out, ref, atol=1e-5, rtol=1e-5), "mismatch vs reference"

    print("KERNEL_OK")
</pallas_src>

<mosaic_0001>
module attributes {stable_mosaic.version = 11 : i64} {
  func.func @_subnet_kernel(%arg0: i32, %arg1: memref<8x32xf32, #tpu.memory_space<vmem>>, %arg2: memref<1x32xf32, #tpu.memory_space<vmem>>, %arg3: memref<8x1xf32, #tpu.memory_space<vmem>>) attributes {dimension_semantics = [#tpu.dimension_semantics<parallel>], iteration_bounds = array<i64: 1>, scalar_prefetch = 0 : i64, scratch_operands = 0 : i64, tpu.core_type = #tpu.core_type<tc>, window_params = [{transform_indices = @transform_0, window_bounds = array<i64: 8, 32>}, {pipeline_mode = #tpu.pipeline_mode<synchronous>, transform_indices = @transform_1, window_bounds = array<i64: 1, 32>}, {transform_indices = @transform_2, window_bounds = array<i64: 8, 1>}]} {
    %c0 = arith.constant 0 : index
    %c0_0 = arith.constant 0 : index
    %0 = vector.load %arg1[%c0, %c0_0] : memref<8x32xf32, #tpu.memory_space<vmem>>, vector<8x32xf32>
    %c0_1 = arith.constant 0 : index
    %c0_2 = arith.constant 0 : index
    %1 = vector.load %arg2[%c0_1, %c0_2] : memref<1x32xf32, #tpu.memory_space<vmem>>, vector<1x32xf32>
    %2 = vector.broadcast %1 : vector<1x32xf32> to vector<8x32xf32>
    %3 = arith.mulf %0, %2 : vector<8x32xf32>
    %cst = arith.constant dense<0.000000e+00> : vector<8xf32>
    %4 = vector.multi_reduction <add>, %3, %cst [1] : vector<8x32xf32> to vector<8xf32>
    %5 = vector.shape_cast %4 : vector<8xf32> to vector<8x1xf32>
    %c0_3 = arith.constant 0 : index
    %c0_4 = arith.constant 0 : index
    %6 = vector.load %arg3[%c0_3, %c0_4] : memref<8x1xf32, #tpu.memory_space<vmem>>, vector<8x1xf32>
    tpu.vector_store %arg3[%c0_3, %c0_4], %5 {strides = array<i32>} : memref<8x1xf32, #tpu.memory_space<vmem>>, vector<8x1xf32>,
    return
  }
  func.func @transform_0(%arg0: i32) -> (i32, i32) {
    %c0_i32 = arith.constant 0 : i32
    %c0_i32_0 = arith.constant 0 : i32
    return %arg0, %c0_i32 : i32, i32
  }
  func.func @transform_1(%arg0: i32) -> (i32, i32) {
    %c0_i32 = arith.constant 0 : i32
    %c0_i32_0 = arith.constant 0 : i32
    %c0_i32_1 = arith.constant 0 : i32
    return %c0_i32, %c0_i32_0 : i32, i32
  }
  func.func @transform_2(%arg0: i32) -> (i32, i32) {
    %c0_i32 = arith.constant 0 : i32
    %c0_i32_0 = arith.constant 0 : i32
    return %arg0, %c0_i32 : i32, i32
  }
}

</mosaic_0001>

<llo_original>
// kernel: tpu_custom_call.1
$region0: #{tpu_custom_call.1}
  #allocation0 [shape = 'u32[]', space=smem, size = 0x4, offset = 0x4, fixed_abs, tag = 'smem constant byte address 0x4 - core index']
  #allocation1 [shape = 'u32[72,128]{1,0:T(1,128)}', space=vmem, size = 0x9000, scoped, tag = 'internal scratch']
  %s0 = inlined_call_operand.hbm [shape: f32[8,32], index: 0, kind: input, shape index: {}]
  %s1 = inlined_call_operand.hbm [shape: f32[1,32], index: 1, kind: input, shape index: {}]
  %s2 = inlined_call_operand.vmem [shape: f32[8,1], index: 2, kind: output, shape index: {}]
  %s3 = sld [smem:[#allocation0]]
  $region26: #{tpu_custom_call.1} parent=0
    _
  %s5 = ssub.s32 1, %s3
  %s6 = scalar_select 0, %s5, %s3
  $region1: #{tpu_custom_call.1} parent=0
    #allocation2 [shape = 'u8[4096]{0}', space=vmem, size = 0x1000, scoped, tag = 'input window, operand 0, single buffered']
    #allocation3 [shape = 's32[1]{0}', space=sflag, size = 0x4, scoped, tag = 'scoped memory for tpu_custom_call.1']
    #allocation4 [shape = 'u8[512]{0}', space=vmem, size = 0x400, scoped, tag = 'input window, operand 1, single buffered']
    #allocation5 [shape = 's32[1]{0}', space=sflag, size = 0x4, scoped, tag = 'scoped memory for tpu_custom_call.1']
    %7 = vsyncpa [#allocation3], 0
    %8 = vsyncpa [#allocation5], 0
    // Predicated region
    $region2: #{tpu_custom_call.1} parent=1 // pred_check
      _
    $region3: #{tpu_custom_call.1} parent=1 // pred_check_branch
      %10 = sbr.rel (0) target = $region5
    $region4: #{tpu_custom_call.1} parent=1 // pred_region
      %12 = vsyncadd [#allocation3], 0
      %s14 = sshll.u32 %s0, 4
      %s15 = int_to_ptr.hbm [resolvable:$true] %s14
      %s16 = sshll.u32 [#allocation2], 4
      %s17 = int_to_ptr.vmem [resolvable:$true] %s16
      %19 = dma.hbm_to_vmem [thread:$0]  %s15, 128, %s17, [#allocation3]
    $region5: #{tpu_custom_call.1} parent=1 // pred_fallthru
      _
    // Predicated region
    $region6: #{tpu_custom_call.1} parent=1 // pred_check
      _
    $region7: #{tpu_custom_call.1} parent=1 // pred_check_branch
      %21 = sbr.rel (0) target = $region9
    $region8: #{tpu_custom_call.1} parent=1 // pred_region
      %23 = vsyncadd [#allocation5], 0
      %s25 = sshll.u32 %s1, 4
      %s26 = int_to_ptr.hbm [resolvable:$true] %s25
      %s27 = sshll.u32 [#allocation4], 4
      %s28 = int_to_ptr.vmem [resolvable:$true] %s27
      %30 = dma.hbm_to_vmem [thread:$0]  %s26, 16, %s28, [#allocation5]
    $region9: #{tpu_custom_call.1} parent=1 // pred_fallthru
      _
    // Predicated region
    $region10: #{tpu_custom_call.1} parent=1 // pred_check
      _
    $region11: #{tpu_custom_call.1} parent=1 // pred_check_branch
      %32 = sbr.rel (0) target = $region13
    $region12: #{tpu_custom_call.1} parent=1 // pred_region
      %34 = dma.done [#allocation3], 128
    $region13: #{tpu_custom_call.1} parent=1 // pred_fallthru
      _
    // Predicated region
    $region14: #{tpu_custom_call.1} parent=1 // pred_check
      _
    $region15: #{tpu_custom_call.1} parent=1 // pred_check_branch
      %36 = sbr.rel (0) target = $region17
    $region16: #{tpu_custom_call.1} parent=1 // pred_region
      %38 = dma.done [#allocation5], 16
    $region17: #{tpu_custom_call.1} parent=1 // pred_fallthru
      _
    %v39 = vld [vmem:[#allocation2] sm:$0xff]
    %v40 = vld [vmem:[#allocation4] sm:$0x1]
    %v42 = vperm.slane %v40, 0
    %v44 = vmul.f32 %v39, %v42
    %vm45 = vcmask 261120
    %v46 = vsel %vm45, %v44, 0.0
    %47 = vadd.xlane.f32.xlu0 %v46
    %v48 = vpop.xlane.xlu0 %47
    %vm49 = vcmask 7168
    %50 = vst.msk [vmem:[%s2] sm:$0xff] %vm49, %v48
    // Predicated region
    $region18: #{tpu_custom_call.1} parent=1 // pred_check
      _
    $region19: #{tpu_custom_call.1} parent=1 // pred_check_branch
      %52 = sbr.rel (0) target = $region21
    $region20: #{tpu_custom_call.1} parent=1 // pred_region
      _
    $region21: #{tpu_custom_call.1} parent=1 // pred_fallthru
      _
    // Predicated region
    $region22: #{tpu_custom_call.1} parent=1 // pred_check
      _
    $region23: #{tpu_custom_call.1} parent=1 // pred_check_branch
      %54 = sbr.rel (0) target = $region25
    $region24: #{tpu_custom_call.1} parent=1 // pred_region
      _
    $region25: #{tpu_custom_call.1} parent=1 // pred_fallthru
      _
    %55 = vsyncpa [#allocation3], 1
    %56 = vsyncpa [#allocation5], 1

</llo_original>
